<compile_context>
chip_gen: v6e
topology: v6e:2x2x1
jax: 0.10.0
libtpu: 0.0.40
codegen_flags: <defaults>
</compile_context>

<pallas_src>
import jax
import jax.numpy as jnp
from jax.experimental import pallas as pl
from jax.experimental.pallas import tpu as pltpu


def tpn_kernel(w_ref, x_ref, o_ref):
    # w_ref: SMEM (6,)   normalised weights [w1, w2, w3, w4, w5, w6]
    # x_ref: VMEM (3, TB) evidence, batch on lanes
    # o_ref: VMEM (1, TB) root value, batch on lanes
    x1 = x_ref[0:1, :]
    x2 = x_ref[1:2, :]
    x3 = x_ref[2:3, :]
    nx1 = 1.0 - x1
    nx2 = 1.0 - x2
    nx3 = 1.0 - x3

    w1 = w_ref[0]
    w2 = w_ref[1]
    w3 = w_ref[2]
    w4 = w_ref[3]
    w5 = w_ref[4]
    w6 = w_ref[5]

    # Leaf products (product nodes 5..8)
    p5 = nx1 * x2
    p6 = x1 * nx2
    p7 = x1 * x2
    p8 = nx1 * nx2

    # Internal sum nodes
    s3 = w5 * p7 + w6 * p8
    s4 = w3 * p5 + w4 * p6

    # Top product nodes and root sum node
    o_ref[...] = w1 * (s3 * nx3) + w2 * (s4 * x3)


def tpn_forward(weights_norm, x, *, tile_b=8192):
    """weights_norm: (6,) f32 normalised SPN weights; x: (B, 3) f32 evidence.

    Returns (B, 1) f32 root values (one independent SPN evaluation per row).
    """
    B = x.shape[0]

    # Lane-dense layout: batch on the 128-lane axis.
    xt = jnp.transpose(x.astype(jnp.float32))            # (3, B)

    # Tile the batch axis: multiple of 128 lanes, capped by tile_b.
    tb = min(tile_b, pl.cdiv(B, 128) * 128)
    padded_b = pl.cdiv(B, tb) * tb
    if padded_b != B:
        xt = jnp.pad(xt, ((0, 0), (0, padded_b - B)))

    grid = (padded_b // tb,)

    out = pl.pallas_call(
        tpn_kernel,
        out_shape=jax.ShapeDtypeStruct((1, padded_b), jnp.float32),
        grid=grid,
        in_specs=[
            pl.BlockSpec(memory_space=pltpu.MemorySpace.SMEM),   # weights, scalar path
            pl.BlockSpec((3, tb), lambda i: (0, i)),             # evidence, lane-dense
        ],
        out_specs=pl.BlockSpec((1, tb), lambda i: (0, i)),       # lane-dense output
        compiler_params=pltpu.CompilerParams(
            dimension_semantics=("parallel",)),                  # 2x on v7x dual-TC
    )(weights_norm, xt)

    return jnp.transpose(out[:, :B])                             # (B, 1)


def init_tpn_params(key):
    """torch.rand(1) x6 -> 6 uniform[0,1) scalars, then per-sum-node normalisation
    (spn.normalise_weights): (w1,w2), (w3,w4), (w5,w6) each sum to 1."""
    raw = jax.random.uniform(key, (6,), dtype=jnp.float32)
    w1, w2, w3, w4, w5, w6 = raw
    w1n, w2n = w1 / (w1 + w2), w2 / (w1 + w2)
    w3n, w4n = w3 / (w3 + w4), w4 / (w3 + w4)
    w5n, w6n = w5 / (w5 + w6), w6 / (w5 + w6)
    return jnp.stack([w1n, w2n, w3n, w4n, w5n, w6n]).astype(jnp.float32)


def tpn_reference(weights_norm, x):
    """Pure-JAX reference of the same SPN for a correctness check."""
    w1, w2, w3, w4, w5, w6 = [weights_norm[i] for i in range(6)]
    x1, x2, x3 = x[:, 0:1], x[:, 1:2], x[:, 2:3]
    nx1, nx2, nx3 = 1.0 - x1, 1.0 - x2, 1.0 - x3
    s3 = w5 * (x1 * x2) + w6 * (nx1 * nx2)
    s4 = w3 * (nx1 * x2) + w4 * (x1 * nx2)
    return w1 * (s3 * nx3) + w2 * (s4 * x3)


if __name__ == "__main__":
    key = jax.random.PRNGKey(0)
    k_w, k_x = jax.random.split(key)

    weights = init_tpn_params(k_w)                           # (6,) normalised weights
    B = 8                                                    # small example batch
    x = jax.random.uniform(k_x, (B, 3), dtype=jnp.float32)   # soft evidence in [0,1)

    out = tpn_forward(weights, x)
    out = jax.block_until_ready(out)

    ref = tpn_reference(weights, x)
    assert out.shape == (B, 1)
    assert jnp.allclose(out, ref, atol=1e-6, rtol=1e-6)

    print("KERNEL_OK")
</pallas_src>

<mosaic_0001>
module attributes {stable_mosaic.version = 11 : i64} {
  func.func @tpn_kernel(%arg0: i32, %arg1: memref<6xf32, #tpu.memory_space<smem>>, %arg2: memref<3x128xf32, #tpu.memory_space<vmem>>, %arg3: memref<1x128xf32, #tpu.memory_space<vmem>>) attributes {dimension_semantics = [#tpu.dimension_semantics<parallel>], iteration_bounds = array<i64: 1>, scalar_prefetch = 0 : i64, scratch_operands = 0 : i64, tpu.core_type = #tpu.core_type<tc>, window_params = [{transform_indices = @transform_0, window_bounds = array<i64: 6>}, {transform_indices = @transform_1, window_bounds = array<i64: 3, 128>}, {transform_indices = @transform_2, window_bounds = array<i64: 1, 128>}]} {
    %c0 = arith.constant 0 : index
    %c0_0 = arith.constant 0 : index
    %0 = vector.load %arg2[%c0, %c0_0] : memref<3x128xf32, #tpu.memory_space<vmem>>, vector<1x128xf32>
    %c1 = arith.constant 1 : index
    %c0_1 = arith.constant 0 : index
    %1 = vector.load %arg2[%c1, %c0_1] : memref<3x128xf32, #tpu.memory_space<vmem>>, vector<1x128xf32>
    %c2 = arith.constant 2 : index
    %c0_2 = arith.constant 0 : index
    %2 = vector.load %arg2[%c2, %c0_2] : memref<3x128xf32, #tpu.memory_space<vmem>>, vector<1x128xf32>
    %cst = arith.constant 1.000000e+00 : f32
    %3 = vector.broadcast %cst : f32 to vector<1x128xf32>
    %4 = arith.subf %3, %0 : vector<1x128xf32>
    %cst_3 = arith.constant 1.000000e+00 : f32
    %5 = vector.broadcast %cst_3 : f32 to vector<1x128xf32>
    %6 = arith.subf %5, %1 : vector<1x128xf32>
    %cst_4 = arith.constant 1.000000e+00 : f32
    %7 = vector.broadcast %cst_4 : f32 to vector<1x128xf32>
    %8 = arith.subf %7, %2 : vector<1x128xf32>
    %c0_5 = arith.constant 0 : index
    %9 = memref.load %arg1[%c0_5] : memref<6xf32, #tpu.memory_space<smem>>
    %c1_6 = arith.constant 1 : index
    %10 = memref.load %arg1[%c1_6] : memref<6xf32, #tpu.memory_space<smem>>
    %c2_7 = arith.constant 2 : index
    %11 = memref.load %arg1[%c2_7] : memref<6xf32, #tpu.memory_space<smem>>
    %c3 = arith.constant 3 : index
    %12 = memref.load %arg1[%c3] : memref<6xf32, #tpu.memory_space<smem>>
    %c4 = arith.constant 4 : index
    %13 = memref.load %arg1[%c4] : memref<6xf32, #tpu.memory_space<smem>>
    %c5 = arith.constant 5 : index
    %14 = memref.load %arg1[%c5] : memref<6xf32, #tpu.memory_space<smem>>
    %15 = arith.mulf %4, %1 : vector<1x128xf32>
    %16 = arith.mulf %0, %6 : vector<1x128xf32>
    %17 = arith.mulf %0, %1 : vector<1x128xf32>
    %18 = arith.mulf %4, %6 : vector<1x128xf32>
    %19 = vector.broadcast %13 : f32 to vector<1x128xf32>
    %20 = arith.mulf %19, %17 : vector<1x128xf32>
    %21 = vector.broadcast %14 : f32 to vector<1x128xf32>
    %22 = arith.mulf %21, %18 : vector<1x128xf32>
    %23 = arith.addf %20, %22 : vector<1x128xf32>
    %24 = vector.broadcast %11 : f32 to vector<1x128xf32>
    %25 = arith.mulf %24, %15 : vector<1x128xf32>
    %26 = vector.broadcast %12 : f32 to vector<1x128xf32>
    %27 = arith.mulf %26, %16 : vector<1x128xf32>
    %28 = arith.addf %25, %27 : vector<1x128xf32>
    %29 = arith.mulf %23, %8 : vector<1x128xf32>
    %30 = vector.broadcast %9 : f32 to vector<1x128xf32>
    %31 = arith.mulf %30, %29 : vector<1x128xf32>
    %32 = arith.mulf %28, %2 : vector<1x128xf32>
    %33 = vector.broadcast %10 : f32 to vector<1x128xf32>
    %34 = arith.mulf %33, %32 : vector<1x128xf32>
    %35 = arith.addf %31, %34 : vector<1x128xf32>
    %c0_8 = arith.constant 0 : index
    %c0_9 = arith.constant 0 : index
    %36 = vector.load %arg3[%c0_8, %c0_9] : memref<1x128xf32, #tpu.memory_space<vmem>>, vector<1x128xf32>
    tpu.vector_store %arg3[%c0_8, %c0_9], %35 {strides = array<i32>} : memref<1x128xf32, #tpu.memory_space<vmem>>, vector<1x128xf32>,
    return
  }
  func.func @transform_0(%arg0: i32) -> i32 {
    %c0_i32 = arith.constant 0 : i32
    %c0_i32_0 = arith.constant 0 : i32
    return %c0_i32 : i32
  }
  func.func @transform_1(%arg0: i32) -> (i32, i32) {
    %c0_i32 = arith.constant 0 : i32
    %c0_i32_0 = arith.constant 0 : i32
    return %c0_i32, %arg0 : i32, i32
  }
  func.func @transform_2(%arg0: i32) -> (i32, i32) {
    %c0_i32 = arith.constant 0 : i32
    %c0_i32_0 = arith.constant 0 : i32
    return %c0_i32, %arg0 : i32, i32
  }
}

</mosaic_0001>

<llo_original>
// kernel: tpu_custom_call.1
$region0: #{tpu_custom_call.1}
  #allocation0 [shape = 'u32[]', space=smem, size = 0x4, offset = 0x4, fixed_abs, tag = 'smem constant byte address 0x4 - core index']
  #allocation1 [shape = 'u32[144,128]{1,0:T(1,128)}', space=vmem, size = 0x12000, scoped, tag = 'internal scratch']
  %s0 = inlined_call_operand.hbm [shape: f32[6], index: 0, kind: input, shape index: {}]
  %s1 = inlined_call_operand.hbm [shape: f32[3,128], index: 1, kind: input, shape index: {}]
  %s2 = inlined_call_operand.hbm [shape: f32[1,128], index: 2, kind: output, shape index: {}]
  %s3 = sld [smem:[#allocation0]]
  $region26: #{tpu_custom_call.1} parent=0
    _
  %s5 = ssub.s32 1, %s3
  %s6 = scalar_select 0, %s5, %s3
  $region1: #{tpu_custom_call.1} parent=0
    #allocation2 [shape = 'u8[512]{0}', space=smem, size = 0x200, scoped, tag = 'input window, operand 0, single buffered']
    #allocation3 [shape = 's32[1]{0}', space=sflag, size = 0x4, scoped, tag = 'scoped memory for tpu_custom_call.1']
    #allocation4 [shape = 's32[1]{0}', space=sflag, size = 0x4, scoped, tag = 'scoped memory for tpu_custom_call.1']
    #allocation5 [shape = 's32[1]{0}', space=sflag, size = 0x4, scoped, tag = 'scoped memory for tpu_custom_call.1']
    #allocation6 [shape = 'u8[2048]{0}', space=vmem, size = 0x800, scoped, tag = 'input window, operand 1, single buffered']
    #allocation7 [shape = 'u8[512]{0}', space=vmem, size = 0x400, scoped, tag = 'output window, operand 0, single buffered']
    %7 = vsyncpa [#allocation5], 0
    %8 = vsyncpa [#allocation3], 0
    %9 = vsyncpa [#allocation4], 0
    // Predicated region
    $region2: #{tpu_custom_call.1} parent=1 // pred_check
      _
    $region3: #{tpu_custom_call.1} parent=1 // pred_check_branch
      %11 = sbr.rel (0) target = $region5
    $region4: #{tpu_custom_call.1} parent=1 // pred_region
      %s13 = ssub.s32 16, 16
      %14 = vsyncadd [#allocation5], %s13
      %17 = dma.hbm_to_smem %s0, 16, [#allocation2], [#allocation5]
    $region5: #{tpu_custom_call.1} parent=1 // pred_fallthru
      _
    // Predicated region
    $region6: #{tpu_custom_call.1} parent=1 // pred_check
      _
    $region7: #{tpu_custom_call.1} parent=1 // pred_check_branch
      %19 = sbr.rel (0) target = $region9
    $region8: #{tpu_custom_call.1} parent=1 // pred_region
      %s21 = ssub.s32 64, 64
      %22 = vsyncadd [#allocation3], %s21
      %s24 = sshll.u32 [#allocation6], 4
      %s25 = int_to_ptr.vmem [resolvable:$true] %s24
      %27 = dma.hbm_to_vmem [thread:$0]  %s1, 64, %s25, [#allocation3]
    $region9: #{tpu_custom_call.1} parent=1 // pred_fallthru
      _
    // Predicated region
    $region10: #{tpu_custom_call.1} parent=1 // pred_check
      _
    $region11: #{tpu_custom_call.1} parent=1 // pred_check_branch
      %29 = sbr.rel (0) target = $region13
    $region12: #{tpu_custom_call.1} parent=1 // pred_region
      %30 = dma.done [#allocation5], 16
    $region13: #{tpu_custom_call.1} parent=1 // pred_fallthru
      _
    // Predicated region
    $region14: #{tpu_custom_call.1} parent=1 // pred_check
      _
    $region15: #{tpu_custom_call.1} parent=1 // pred_check_branch
      %32 = sbr.rel (0) target = $region17
    $region16: #{tpu_custom_call.1} parent=1 // pred_region
      %33 = dma.done [#allocation3], 64
    $region17: #{tpu_custom_call.1} parent=1 // pred_fallthru
      _
    %34 = sfence
    %v35 = vld [vmem:[#allocation6] sm:$0x1]
    %v36 = vld [vmem:[#allocation6 + $0x1] sm:$0x1]
    %v37 = vld [vmem:[#allocation6 + $0x2] sm:$0x1]
    %v38 = vsub.f32 1.0, %v35
    %v39 = vsub.f32 1.0, %v36
    %v40 = vsub.f32 1.0, %v37
    %s41 = sld [smem:[#allocation2]]
    %s42 = sld [smem:[#allocation2 + $0x1]]
    %s43 = sld [smem:[#allocation2 + $0x2]]
    %s44 = sld [smem:[#allocation2 + $0x3]]
    %s45 = sld [smem:[#allocation2 + $0x4]]
    %s46 = sld [smem:[#allocation2 + $0x5]]
    %v47 = vmul.f32 %v38, %v36
    %v48 = vmul.f32 %v35, %v39
    %v49 = vmul.f32 %v35, %v36
    %v50 = vmul.f32 %v38, %v39
    %v51 = vstv %s45
    %v52 = vmul.f32 %v51, %v49
    %v53 = vstv %s46
    %v54 = vmul.f32 %v53, %v50
    %v55 = vadd.f32 %v52, %v54
    %v56 = vstv %s43
    %v57 = vmul.f32 %v56, %v47
    %v58 = vstv %s44
    %v59 = vmul.f32 %v58, %v48
    %v60 = vadd.f32 %v57, %v59
    %v61 = vmul.f32 %v55, %v40
    %v62 = vstv %s41
    %v63 = vmul.f32 %v62, %v61
    %v64 = vmul.f32 %v60, %v37
    %v65 = vstv %s42
    %v66 = vmul.f32 %v65, %v64
    %v67 = vadd.f32 %v63, %v66
    %68 = vst [vmem:[#allocation7] sm:$0x1] %v67
    // Predicated region
    $region18: #{tpu_custom_call.1} parent=1 // pred_check
      _
    $region19: #{tpu_custom_call.1} parent=1 // pred_check_branch
      %70 = sbr.rel (0) target = $region21
    $region20: #{tpu_custom_call.1} parent=1 // pred_region
      %s72 = ssub.s32 16, 16
      %73 = vsyncadd [#allocation4], %s72
      %s75 = sshll.u32 [#allocation7], 4
      %s76 = int_to_ptr.vmem [resolvable:$true] %s75
      %78 = dma.vmem_to_hbm [thread:$0]  %s76, 16, %s2, [#allocation4]
    $region21: #{tpu_custom_call.1} parent=1 // pred_fallthru
      _
    // Predicated region
    $region22: #{tpu_custom_call.1} parent=1 // pred_check
      _
    $region23: #{tpu_custom_call.1} parent=1 // pred_check_branch
      %80 = sbr.rel (0) target = $region25
    $region24: #{tpu_custom_call.1} parent=1 // pred_region
      %81 = dma.done [#allocation4], 16
    $region25: #{tpu_custom_call.1} parent=1 // pred_fallthru
      _
    %82 = vsyncpa [#allocation3], 1
    %83 = vsyncpa [#allocation4], 1
    %84 = vsyncpa [#allocation5], 1

</llo_original>
